<compile_context>
chip_gen: v5e
topology: v5e:2x2
jax: 0.10.0
libtpu: 0.0.40
codegen_flags: <defaults>
</compile_context>

<pallas_src>
import functools

import jax
import jax.numpy as jnp
from jax import lax
from jax.experimental import pallas as pl
from jax.experimental.pallas import tpu as pltpu

LANE = 128
STRIP_ROWS = 8                    # one full (8,128) vreg per feature per strip
STRIP_COLS = STRIP_ROWS * LANE    # 1024 batch elements per compute strip

# Flat parameter layout (row-major):
#   w1[2,4] @ 0, b1[4] @ 8, w2[4,2] @ 12, b2[2] @ 20,
#   w3[2,4] @ 22, b3[4] @ 30, w4[4,2] @ 34, b4[2] @ 42   -> 44 scalars total
_W1, _B1, _W2, _B2, _W3, _B3, _W4, _B4 = 0, 8, 12, 20, 22, 30, 34, 42
_NPARAMS = 44


def autoencoder_kernel(p_ref, x_ref, o_ref):
    """p_ref: (44,) f32 in SMEM.
    x_ref / o_ref: (2, R, 128) f32 in VMEM, R a multiple of 8.
    Feature index on the leading axis; batch fills the (sublane, lane) plane."""
    rows = x_ref.shape[1]
    n_strips = rows // STRIP_ROWS

    # Hoist all 44 scalar parameter reads out of the strip loop (scalar path).
    w1 = [[p_ref[_W1 + 4 * i + o] for o in range(4)] for i in range(2)]
    b1 = [p_ref[_B1 + o] for o in range(4)]
    w2 = [[p_ref[_W2 + 2 * k + o] for o in range(2)] for k in range(4)]
    b2 = [p_ref[_B2 + o] for o in range(2)]
    w3 = [[p_ref[_W3 + 4 * i + o] for o in range(4)] for i in range(2)]
    b3 = [p_ref[_B3 + o] for o in range(4)]
    w4 = [[p_ref[_W4 + 2 * k + o] for o in range(2)] for k in range(4)]
    b4 = [p_ref[_B4 + o] for o in range(2)]

    def strip(s, carry):
        r0 = pl.multiple_of(s * STRIP_ROWS, STRIP_ROWS)
        x0 = x_ref[0, pl.ds(r0, STRIP_ROWS), :]      # (8, 128) full vreg
        x1 = x_ref[1, pl.ds(r0, STRIP_ROWS), :]

        # ---- encoder: Linear(2 -> 4) + ReLU (unrolled VPU broadcast-MACs) ----
        h = [jnp.maximum(b1[o] + w1[0][o] * x0 + w1[1][o] * x1, 0.0)
             for o in range(4)]

        # ---- encoder: Linear(4 -> 2) ----
        z = []
        for o in range(2):
            acc = b2[o] + w2[0][o] * h[0]
            for k in range(1, 4):
                acc = acc + w2[k][o] * h[k]
            z.append(acc)

        # ---- decoder: Linear(2 -> 4) + ReLU ----
        d = [jnp.maximum(b3[o] + w3[0][o] * z[0] + w3[1][o] * z[1], 0.0)
             for o in range(4)]

        # ---- decoder: Linear(4 -> 2); store each output plane directly ----
        for o in range(2):
            acc = b4[o] + w4[0][o] * d[0]
            for k in range(1, 4):
                acc = acc + w4[k][o] * d[k]
            o_ref[o, pl.ds(r0, STRIP_ROWS), :] = acc.astype(o_ref.dtype)
        return carry

    lax.fori_loop(0, n_strips, strip, None, unroll=True)


def _round_up(n, m):
    return ((n + m - 1) // m) * m


def _cdiv(a, b):
    return (a + b - 1) // b


def flatten_params(params):
    return jnp.concatenate([
        params["w1"].reshape(-1), params["b1"].reshape(-1),
        params["w2"].reshape(-1), params["b2"].reshape(-1),
        params["w3"].reshape(-1), params["b3"].reshape(-1),
        params["w4"].reshape(-1), params["b4"].reshape(-1),
    ]).astype(jnp.float32)


@functools.partial(jax.jit, static_argnames=("max_tile_cols", "min_grid"))
def autoencoder_forward(x, flat_params, *, max_tile_cols=32 * 1024, min_grid=8):
    """x: [B, 2] float32 -> [B, 2] float32."""
    B = x.shape[0]

    # Pad the batch only to a strip (1024) multiple, then derive the tile size:
    # big tiles to amortize per-grid-step overhead, but keep >= min_grid steps
    # for large batches so both v7x TensorCores stay busy.
    n_strips = _cdiv(max(B, 1), STRIP_COLS)
    max_strips_per_tile = max(1, max_tile_cols // STRIP_COLS)
    strips_per_tile = max(1, min(max_strips_per_tile, _cdiv(n_strips, min_grid)))
    grid = _cdiv(n_strips, strips_per_tile)
    n_strips_pad = grid * strips_per_tile
    B_pad = n_strips_pad * STRIP_COLS
    rows_per_tile = strips_per_tile * STRIP_ROWS
    n_rows = n_strips_pad * STRIP_ROWS

    # Feature-major planes: (2, rows, 128) -> each feature fills (8,128) vregs.
    # TODO(synk): keep the surrounding graph feature-major end-to-end to drop
    # this transpose (and the one on the way out) for large-B pipelines.
    xp = jnp.pad(x.astype(jnp.float32), ((0, B_pad - B), (0, 0)))
    xT = xp.T.reshape(2, n_rows, LANE)

    out = pl.pallas_call(
        autoencoder_kernel,
        out_shape=jax.ShapeDtypeStruct((2, n_rows, LANE), jnp.float32),
        grid=(grid,),
        in_specs=[
            pl.BlockSpec(memory_space=pltpu.MemorySpace.SMEM),          # 44 params
            pl.BlockSpec((2, rows_per_tile, LANE), lambda i: (0, i, 0)),  # input tile
        ],
        out_specs=pl.BlockSpec((2, rows_per_tile, LANE), lambda i: (0, i, 0)),
        compiler_params=pltpu.CompilerParams(
            dimension_semantics=("parallel",),      # shard batch tiles across TCs
        ),
        cost_estimate=pl.CostEstimate(
            flops=88 * B_pad, transcendentals=0, bytes_accessed=16 * B_pad),
    )(flat_params, xT)

    return out.reshape(2, B_pad)[:, :B].T           # (B, 2)


def init_params(key):
    """PyTorch nn.Linear default init: U(-1/sqrt(fan_in), +1/sqrt(fan_in)).
    Weights stored as [in, out] (transpose of torch's [out, in]) so y = x @ W + b."""
    def linear(k, fan_in, fan_out):
        kw, kb = jax.random.split(k)
        bound = 1.0 / jnp.sqrt(float(fan_in))
        w = jax.random.uniform(kw, (fan_in, fan_out), jnp.float32, -bound, bound)
        b = jax.random.uniform(kb, (fan_out,), jnp.float32, -bound, bound)
        return w, b

    k1, k2, k3, k4 = jax.random.split(key, 4)
    w1, b1 = linear(k1, 2, 4)   # encoder Linear(2, 4)
    w2, b2 = linear(k2, 4, 2)   # encoder Linear(4, 2)
    w3, b3 = linear(k3, 2, 4)   # decoder Linear(2, 4)
    w4, b4 = linear(k4, 4, 2)   # decoder Linear(4, 2)
    return {"w1": w1, "b1": b1, "w2": w2, "b2": b2,
            "w3": w3, "b3": b3, "w4": w4, "b4": b4}


def reference_forward(x, p):
    """Pure-JAX reference (same math as the PyTorch module)."""
    h = jnp.maximum(x @ p["w1"] + p["b1"], 0.0)
    z = h @ p["w2"] + p["b2"]
    d = jnp.maximum(z @ p["w3"] + p["b3"], 0.0)
    return d @ p["w4"] + p["b4"]


if __name__ == "__main__":
    key = jax.random.PRNGKey(0)
    k_params, k_x = jax.random.split(key)

    params = init_params(k_params)
    flat = flatten_params(params)
    assert flat.shape == (_NPARAMS,)

    x = jax.random.normal(k_x, (8, 2), dtype=jnp.float32)   # batch=8, features=2

    out = autoencoder_forward(x, flat)
    out = jax.block_until_ready(out)

    ref = reference_forward(x, params)
    assert out.shape == (8, 2)
    assert jnp.allclose(out, ref, atol=1e-5, rtol=1e-5), (out, ref)

    print("KERNEL_OK")
</pallas_src>

<mosaic_0001>
module attributes {stable_mosaic.version = 11 : i64} {
  func.func @autoencoder_kernel(%arg0: i32, %arg1: memref<44xf32, #tpu.memory_space<smem>>, %arg2: memref<2x8x128xf32, #tpu.memory_space<vmem>>, %arg3: memref<2x8x128xf32, #tpu.memory_space<vmem>>) attributes {dimension_semantics = [#tpu.dimension_semantics<parallel>], iteration_bounds = array<i64: 1>, scalar_prefetch = 0 : i64, scratch_operands = 0 : i64, tpu.core_type = #tpu.core_type<tc>, window_params = [{transform_indices = @transform_0, window_bounds = array<i64: 44>}, {transform_indices = @transform_1, window_bounds = array<i64: 2, 8, 128>}, {transform_indices = @transform_2, window_bounds = array<i64: 2, 8, 128>}]} {
    %c0 = arith.constant 0 : index
    %0 = memref.load %arg1[%c0] : memref<44xf32, #tpu.memory_space<smem>>
    %c1 = arith.constant 1 : index
    %1 = memref.load %arg1[%c1] : memref<44xf32, #tpu.memory_space<smem>>
    %c2 = arith.constant 2 : index
    %2 = memref.load %arg1[%c2] : memref<44xf32, #tpu.memory_space<smem>>
    %c3 = arith.constant 3 : index
    %3 = memref.load %arg1[%c3] : memref<44xf32, #tpu.memory_space<smem>>
    %c4 = arith.constant 4 : index
    %4 = memref.load %arg1[%c4] : memref<44xf32, #tpu.memory_space<smem>>
    %c5 = arith.constant 5 : index
    %5 = memref.load %arg1[%c5] : memref<44xf32, #tpu.memory_space<smem>>
    %c6 = arith.constant 6 : index
    %6 = memref.load %arg1[%c6] : memref<44xf32, #tpu.memory_space<smem>>
    %c7 = arith.constant 7 : index
    %7 = memref.load %arg1[%c7] : memref<44xf32, #tpu.memory_space<smem>>
    %c8 = arith.constant 8 : index
    %8 = memref.load %arg1[%c8] : memref<44xf32, #tpu.memory_space<smem>>
    %c9 = arith.constant 9 : index
    %9 = memref.load %arg1[%c9] : memref<44xf32, #tpu.memory_space<smem>>
    %c10 = arith.constant 10 : index
    %10 = memref.load %arg1[%c10] : memref<44xf32, #tpu.memory_space<smem>>
    %c11 = arith.constant 11 : index
    %11 = memref.load %arg1[%c11] : memref<44xf32, #tpu.memory_space<smem>>
    %c12 = arith.constant 12 : index
    %12 = memref.load %arg1[%c12] : memref<44xf32, #tpu.memory_space<smem>>
    %c13 = arith.constant 13 : index
    %13 = memref.load %arg1[%c13] : memref<44xf32, #tpu.memory_space<smem>>
    %c14 = arith.constant 14 : index
    %14 = memref.load %arg1[%c14] : memref<44xf32, #tpu.memory_space<smem>>
    %c15 = arith.constant 15 : index
    %15 = memref.load %arg1[%c15] : memref<44xf32, #tpu.memory_space<smem>>
    %c16 = arith.constant 16 : index
    %16 = memref.load %arg1[%c16] : memref<44xf32, #tpu.memory_space<smem>>
    %c17 = arith.constant 17 : index
    %17 = memref.load %arg1[%c17] : memref<44xf32, #tpu.memory_space<smem>>
    %c18 = arith.constant 18 : index
    %18 = memref.load %arg1[%c18] : memref<44xf32, #tpu.memory_space<smem>>
    %c19 = arith.constant 19 : index
    %19 = memref.load %arg1[%c19] : memref<44xf32, #tpu.memory_space<smem>>
    %c20 = arith.constant 20 : index
    %20 = memref.load %arg1[%c20] : memref<44xf32, #tpu.memory_space<smem>>
    %c21 = arith.constant 21 : index
    %21 = memref.load %arg1[%c21] : memref<44xf32, #tpu.memory_space<smem>>
    %c22 = arith.constant 22 : index
    %22 = memref.load %arg1[%c22] : memref<44xf32, #tpu.memory_space<smem>>
    %c23 = arith.constant 23 : index
    %23 = memref.load %arg1[%c23] : memref<44xf32, #tpu.memory_space<smem>>
    %c24 = arith.constant 24 : index
    %24 = memref.load %arg1[%c24] : memref<44xf32, #tpu.memory_space<smem>>
    %c25 = arith.constant 25 : index
    %25 = memref.load %arg1[%c25] : memref<44xf32, #tpu.memory_space<smem>>
    %c26 = arith.constant 26 : index
    %26 = memref.load %arg1[%c26] : memref<44xf32, #tpu.memory_space<smem>>
    %c27 = arith.constant 27 : index
    %27 = memref.load %arg1[%c27] : memref<44xf32, #tpu.memory_space<smem>>
    %c28 = arith.constant 28 : index
    %28 = memref.load %arg1[%c28] : memref<44xf32, #tpu.memory_space<smem>>
    %c29 = arith.constant 29 : index
    %29 = memref.load %arg1[%c29] : memref<44xf32, #tpu.memory_space<smem>>
    %c30 = arith.constant 30 : index
    %30 = memref.load %arg1[%c30] : memref<44xf32, #tpu.memory_space<smem>>
    %c31 = arith.constant 31 : index
    %31 = memref.load %arg1[%c31] : memref<44xf32, #tpu.memory_space<smem>>
    %c32 = arith.constant 32 : index
    %32 = memref.load %arg1[%c32] : memref<44xf32, #tpu.memory_space<smem>>
    %c33 = arith.constant 33 : index
    %33 = memref.load %arg1[%c33] : memref<44xf32, #tpu.memory_space<smem>>
    %c34 = arith.constant 34 : index
    %34 = memref.load %arg1[%c34] : memref<44xf32, #tpu.memory_space<smem>>
    %c35 = arith.constant 35 : index
    %35 = memref.load %arg1[%c35] : memref<44xf32, #tpu.memory_space<smem>>
    %c36 = arith.constant 36 : index
    %36 = memref.load %arg1[%c36] : memref<44xf32, #tpu.memory_space<smem>>
    %c37 = arith.constant 37 : index
    %37 = memref.load %arg1[%c37] : memref<44xf32, #tpu.memory_space<smem>>
    %c38 = arith.constant 38 : index
    %38 = memref.load %arg1[%c38] : memref<44xf32, #tpu.memory_space<smem>>
    %c39 = arith.constant 39 : index
    %39 = memref.load %arg1[%c39] : memref<44xf32, #tpu.memory_space<smem>>
    %c40 = arith.constant 40 : index
    %40 = memref.load %arg1[%c40] : memref<44xf32, #tpu.memory_space<smem>>
    %c41 = arith.constant 41 : index
    %41 = memref.load %arg1[%c41] : memref<44xf32, #tpu.memory_space<smem>>
    %c42 = arith.constant 42 : index
    %42 = memref.load %arg1[%c42] : memref<44xf32, #tpu.memory_space<smem>>
    %c43 = arith.constant 43 : index
    %43 = memref.load %arg1[%c43] : memref<44xf32, #tpu.memory_space<smem>>
    %c0_i32 = arith.constant 0 : i32
    %c8_i32 = arith.constant 8 : i32
    %44 = arith.muli %c0_i32, %c8_i32 : i32
    %45 = tpu.assume_multiple %44, 8 : i32
    %c0_0 = arith.constant 0 : index
    %46 = arith.index_cast %45 : i32 to index
    %c0_1 = arith.constant 0 : index
    %47 = vector.load %arg2[%c0_0, %46, %c0_1] : memref<2x8x128xf32, #tpu.memory_space<vmem>>, vector<1x8x128xf32>
    %48 = vector.shape_cast %47 : vector<1x8x128xf32> to vector<8x128xf32>
    %c1_2 = arith.constant 1 : index
    %49 = arith.index_cast %45 : i32 to index
    %c0_3 = arith.constant 0 : index
    %50 = vector.load %arg2[%c1_2, %49, %c0_3] : memref<2x8x128xf32, #tpu.memory_space<vmem>>, vector<1x8x128xf32>
    %51 = vector.shape_cast %50 : vector<1x8x128xf32> to vector<8x128xf32>
    %52 = vector.broadcast %0 : f32 to vector<8x128xf32>
    %53 = arith.mulf %52, %48 : vector<8x128xf32>
    %54 = vector.broadcast %8 : f32 to vector<8x128xf32>
    %55 = arith.addf %54, %53 : vector<8x128xf32>
    %56 = vector.broadcast %4 : f32 to vector<8x128xf32>
    %57 = arith.mulf %56, %51 : vector<8x128xf32>
    %58 = arith.addf %55, %57 : vector<8x128xf32>
    %cst = arith.constant 0.000000e+00 : f32
    %59 = vector.broadcast %cst : f32 to vector<8x128xf32>
    %60 = arith.maximumf %58, %59 : vector<8x128xf32>
    %61 = vector.broadcast %1 : f32 to vector<8x128xf32>
    %62 = arith.mulf %61, %48 : vector<8x128xf32>
    %63 = vector.broadcast %9 : f32 to vector<8x128xf32>
    %64 = arith.addf %63, %62 : vector<8x128xf32>
    %65 = vector.broadcast %5 : f32 to vector<8x128xf32>
    %66 = arith.mulf %65, %51 : vector<8x128xf32>
    %67 = arith.addf %64, %66 : vector<8x128xf32>
    %cst_4 = arith.constant 0.000000e+00 : f32
    %68 = vector.broadcast %cst_4 : f32 to vector<8x128xf32>
    %69 = arith.maximumf %67, %68 : vector<8x128xf32>
    %70 = vector.broadcast %2 : f32 to vector<8x128xf32>
    %71 = arith.mulf %70, %48 : vector<8x128xf32>
    %72 = vector.broadcast %10 : f32 to vector<8x128xf32>
    %73 = arith.addf %72, %71 : vector<8x128xf32>
    %74 = vector.broadcast %6 : f32 to vector<8x128xf32>
    %75 = arith.mulf %74, %51 : vector<8x128xf32>
    %76 = arith.addf %73, %75 : vector<8x128xf32>
    %cst_5 = arith.constant 0.000000e+00 : f32
    %77 = vector.broadcast %cst_5 : f32 to vector<8x128xf32>
    %78 = arith.maximumf %76, %77 : vector<8x128xf32>
    %79 = vector.broadcast %3 : f32 to vector<8x128xf32>
    %80 = arith.mulf %79, %48 : vector<8x128xf32>
    %81 = vector.broadcast %11 : f32 to vector<8x128xf32>
    %82 = arith.addf %81, %80 : vector<8x128xf32>
    %83 = vector.broadcast %7 : f32 to vector<8x128xf32>
    %84 = arith.mulf %83, %51 : vector<8x128xf32>
    %85 = arith.addf %82, %84 : vector<8x128xf32>
    %cst_6 = arith.constant 0.000000e+00 : f32
    %86 = vector.broadcast %cst_6 : f32 to vector<8x128xf32>
    %87 = arith.maximumf %85, %86 : vector<8x128xf32>
    %88 = vector.broadcast %12 : f32 to vector<8x128xf32>
    %89 = arith.mulf %88, %60 : vector<8x128xf32>
    %90 = vector.broadcast %20 : f32 to vector<8x128xf32>
    %91 = arith.addf %90, %89 : vector<8x128xf32>
    %92 = vector.broadcast %14 : f32 to vector<8x128xf32>
    %93 = arith.mulf %92, %69 : vector<8x128xf32>
    %94 = arith.addf %91, %93 : vector<8x128xf32>
    %95 = vector.broadcast %16 : f32 to vector<8x128xf32>
    %96 = arith.mulf %95, %78 : vector<8x128xf32>
    %97 = arith.addf %94, %96 : vector<8x128xf32>
    %98 = vector.broadcast %18 : f32 to vector<8x128xf32>
    %99 = arith.mulf %98, %87 : vector<8x128xf32>
    %100 = arith.addf %97, %99 : vector<8x128xf32>
    %101 = vector.broadcast %13 : f32 to vector<8x128xf32>
    %102 = arith.mulf %101, %60 : vector<8x128xf32>
    %103 = vector.broadcast %21 : f32 to vector<8x128xf32>
    %104 = arith.addf %103, %102 : vector<8x128xf32>
    %105 = vector.broadcast %15 : f32 to vector<8x128xf32>
    %106 = arith.mulf %105, %69 : vector<8x128xf32>
    %107 = arith.addf %104, %106 : vector<8x128xf32>
    %108 = vector.broadcast %17 : f32 to vector<8x128xf32>
    %109 = arith.mulf %108, %78 : vector<8x128xf32>
    %110 = arith.addf %107, %109 : vector<8x128xf32>
    %111 = vector.broadcast %19 : f32 to vector<8x128xf32>
    %112 = arith.mulf %111, %87 : vector<8x128xf32>
    %113 = arith.addf %110, %112 : vector<8x128xf32>
    %114 = vector.broadcast %22 : f32 to vector<8x128xf32>
    %115 = arith.mulf %114, %100 : vector<8x128xf32>
    %116 = vector.broadcast %30 : f32 to vector<8x128xf32>
    %117 = arith.addf %116, %115 : vector<8x128xf32>
    %118 = vector.broadcast %26 : f32 to vector<8x128xf32>
    %119 = arith.mulf %118, %113 : vector<8x128xf32>
    %120 = arith.addf %117, %119 : vector<8x128xf32>
    %cst_7 = arith.constant 0.000000e+00 : f32
    %121 = vector.broadcast %cst_7 : f32 to vector<8x128xf32>
    %122 = arith.maximumf %120, %121 : vector<8x128xf32>
    %123 = vector.broadcast %23 : f32 to vector<8x128xf32>
    %124 = arith.mulf %123, %100 : vector<8x128xf32>
    %125 = vector.broadcast %31 : f32 to vector<8x128xf32>
    %126 = arith.addf %125, %124 : vector<8x128xf32>
    %127 = vector.broadcast %27 : f32 to vector<8x128xf32>
    %128 = arith.mulf %127, %113 : vector<8x128xf32>
    %129 = arith.addf %126, %128 : vector<8x128xf32>
    %cst_8 = arith.constant 0.000000e+00 : f32
    %130 = vector.broadcast %cst_8 : f32 to vector<8x128xf32>
    %131 = arith.maximumf %129, %130 : vector<8x128xf32>
    %132 = vector.broadcast %24 : f32 to vector<8x128xf32>
    %133 = arith.mulf %132, %100 : vector<8x128xf32>
    %134 = vector.broadcast %32 : f32 to vector<8x128xf32>
    %135 = arith.addf %134, %133 : vector<8x128xf32>
    %136 = vector.broadcast %28 : f32 to vector<8x128xf32>
    %137 = arith.mulf %136, %113 : vector<8x128xf32>
    %138 = arith.addf %135, %137 : vector<8x128xf32>
    %cst_9 = arith.constant 0.000000e+00 : f32
    %139 = vector.broadcast %cst_9 : f32 to vector<8x128xf32>
    %140 = arith.maximumf %138, %139 : vector<8x128xf32>
    %141 = vector.broadcast %25 : f32 to vector<8x128xf32>
    %142 = arith.mulf %141, %100 : vector<8x128xf32>
    %143 = vector.broadcast %33 : f32 to vector<8x128xf32>
    %144 = arith.addf %143, %142 : vector<8x128xf32>
    %145 = vector.broadcast %29 : f32 to vector<8x128xf32>
    %146 = arith.mulf %145, %113 : vector<8x128xf32>
    %147 = arith.addf %144, %146 : vector<8x128xf32>
    %cst_10 = arith.constant 0.000000e+00 : f32
    %148 = vector.broadcast %cst_10 : f32 to vector<8x128xf32>
    %149 = arith.maximumf %147, %148 : vector<8x128xf32>
    %150 = vector.broadcast %34 : f32 to vector<8x128xf32>
    %151 = arith.mulf %150, %122 : vector<8x128xf32>
    %152 = vector.broadcast %42 : f32 to vector<8x128xf32>
    %153 = arith.addf %152, %151 : vector<8x128xf32>
    %154 = vector.broadcast %36 : f32 to vector<8x128xf32>
    %155 = arith.mulf %154, %131 : vector<8x128xf32>
    %156 = arith.addf %153, %155 : vector<8x128xf32>
    %157 = vector.broadcast %38 : f32 to vector<8x128xf32>
    %158 = arith.mulf %157, %140 : vector<8x128xf32>
    %159 = arith.addf %156, %158 : vector<8x128xf32>
    %160 = vector.broadcast %40 : f32 to vector<8x128xf32>
    %161 = arith.mulf %160, %149 : vector<8x128xf32>
    %162 = arith.addf %159, %161 : vector<8x128xf32>
    %c0_11 = arith.constant 0 : index
    %163 = arith.index_cast %45 : i32 to index
    %c0_12 = arith.constant 0 : index
    %164 = vector.load %arg3[%c0_11, %163, %c0_12] : memref<2x8x128xf32, #tpu.memory_space<vmem>>, vector<1x8x128xf32>
    %165 = vector.shape_cast %164 : vector<1x8x128xf32> to vector<8x128xf32>
    %166 = vector.shape_cast %162 : vector<8x128xf32> to vector<1x8x128xf32>
    tpu.vector_store %arg3[%c0_11, %163, %c0_12], %166 {strides = array<i32>} : memref<2x8x128xf32, #tpu.memory_space<vmem>>, vector<1x8x128xf32>,
    %167 = vector.broadcast %35 : f32 to vector<8x128xf32>
    %168 = arith.mulf %167, %122 : vector<8x128xf32>
    %169 = vector.broadcast %43 : f32 to vector<8x128xf32>
    %170 = arith.addf %169, %168 : vector<8x128xf32>
    %171 = vector.broadcast %37 : f32 to vector<8x128xf32>
    %172 = arith.mulf %171, %131 : vector<8x128xf32>
    %173 = arith.addf %170, %172 : vector<8x128xf32>
    %174 = vector.broadcast %39 : f32 to vector<8x128xf32>
    %175 = arith.mulf %174, %140 : vector<8x128xf32>
    %176 = arith.addf %173, %175 : vector<8x128xf32>
    %177 = vector.broadcast %41 : f32 to vector<8x128xf32>
    %178 = arith.mulf %177, %149 : vector<8x128xf32>
    %179 = arith.addf %176, %178 : vector<8x128xf32>
    %c1_13 = arith.constant 1 : index
    %180 = arith.index_cast %45 : i32 to index
    %c0_14 = arith.constant 0 : index
    %181 = vector.load %arg3[%c1_13, %180, %c0_14] : memref<2x8x128xf32, #tpu.memory_space<vmem>>, vector<1x8x128xf32>
    %182 = vector.shape_cast %181 : vector<1x8x128xf32> to vector<8x128xf32>
    %183 = vector.shape_cast %179 : vector<8x128xf32> to vector<1x8x128xf32>
    tpu.vector_store %arg3[%c1_13, %180, %c0_14], %183 {strides = array<i32>} : memref<2x8x128xf32, #tpu.memory_space<vmem>>, vector<1x8x128xf32>,
    %c1_i32 = arith.constant 1 : i32
    return
  }
  func.func @transform_0(%arg0: i32) -> i32 {
    %c0_i32 = arith.constant 0 : i32
    %c0_i32_0 = arith.constant 0 : i32
    return %c0_i32 : i32
  }
  func.func @transform_1(%arg0: i32) -> (i32, i32, i32) {
    %c0_i32 = arith.constant 0 : i32
    %c0_i32_0 = arith.constant 0 : i32
    %c0_i32_1 = arith.constant 0 : i32
    return %c0_i32, %arg0, %c0_i32_0 : i32, i32, i32
  }
  func.func @transform_2(%arg0: i32) -> (i32, i32, i32) {
    %c0_i32 = arith.constant 0 : i32
    %c0_i32_0 = arith.constant 0 : i32
    %c0_i32_1 = arith.constant 0 : i32
    return %c0_i32, %arg0, %c0_i32_0 : i32, i32, i32
  }
}

</mosaic_0001>

<llo_original>
// kernel: autoencoder_forward.1
$region0: #{autoencoder_forward.1}
  #allocation0 [shape = 'u32[]', space=smem, size = 0x4, offset = 0x4, fixed_abs, tag = 'smem constant byte address 0x4 - core index']
  #allocation1 [shape = 'u32[72,128]{1,0:T(1,128)}', space=vmem, size = 0x9000, scoped, tag = 'internal scratch']
  %s0 = inlined_call_operand.vmem [shape: f32[44], index: 0, kind: input, shape index: {}]
  %s1 = inlined_call_operand.vmem [shape: f32[2,8,128], index: 1, kind: input, shape index: {}]
  %s2 = inlined_call_operand.vmem [shape: f32[2,8,128], index: 2, kind: output, shape index: {}]
  %s3 = sld [smem:[#allocation0]]
  $region22: #{autoencoder_forward.1} parent=0
    _
  %s5 = ssub.s32 1, %s3
  %s6 = scalar_select 0, %s5, %s3
  $region1: #{autoencoder_forward.1} parent=0
    #allocation2 [shape = 'u8[512]{0}', space=smem, size = 0x200, scoped, tag = 'input window, operand 0, single buffered']
    #allocation3 [shape = 's32[1]{0}', space=sflag, size = 0x4, scoped, tag = 'scoped memory for autoencoder_forward.1']
    %7 = vsyncpa [#allocation3], 0
    // Predicated region
    $region2: #{autoencoder_forward.1} parent=1 // pred_check
      _
    $region3: #{autoencoder_forward.1} parent=1 // pred_check_branch
      %9 = sbr.rel (0) target = $region5
    $region4: #{autoencoder_forward.1} parent=1 // pred_region
      %11 = vsyncadd [#allocation3], 0
      %s13 = sshll.u32 %s0, 4
      %s14 = int_to_ptr.vmem [resolvable:$true] %s13
      %16 = dma.vmem_to_smem %s14, 16, [#allocation2], [#allocation3]
    $region5: #{autoencoder_forward.1} parent=1 // pred_fallthru
      _
    // Predicated region
    $region6: #{autoencoder_forward.1} parent=1 // pred_check
      _
    $region7: #{autoencoder_forward.1} parent=1 // pred_check_branch
      %18 = sbr.rel (0) target = $region9
    $region8: #{autoencoder_forward.1} parent=1 // pred_region
      _
    $region9: #{autoencoder_forward.1} parent=1 // pred_fallthru
      _
    // Predicated region
    $region10: #{autoencoder_forward.1} parent=1 // pred_check
      _
    $region11: #{autoencoder_forward.1} parent=1 // pred_check_branch
      %20 = sbr.rel (0) target = $region13
    $region12: #{autoencoder_forward.1} parent=1 // pred_region
      %22 = dma.done [#allocation3], 16
    $region13: #{autoencoder_forward.1} parent=1 // pred_fallthru
      _
    %23 = sfence
    %s24 = sld [smem:[#allocation2]]
    %s25 = sld [smem:[#allocation2 + $0x1]]
    %s26 = sld [smem:[#allocation2 + $0x2]]
    %s27 = sld [smem:[#allocation2 + $0x3]]
    %s28 = sld [smem:[#allocation2 + $0x4]]
    %s29 = sld [smem:[#allocation2 + $0x5]]
    %s30 = sld [smem:[#allocation2 + $0x6]]
    %s31 = sld [smem:[#allocation2 + $0x7]]
    %s32 = sld [smem:[#allocation2 + $0x8]]
    %s33 = sld [smem:[#allocation2 + $0x9]]
    %s34 = sld [smem:[#allocation2 + $0xa]]
    %s35 = sld [smem:[#allocation2 + $0xb]]
    %s36 = sld [smem:[#allocation2 + $0xc]]
    %s37 = sld [smem:[#allocation2 + $0xd]]
    %s38 = sld [smem:[#allocation2 + $0xe]]
    %s39 = sld [smem:[#allocation2 + $0xf]]
    %s40 = sld [smem:[#allocation2 + $0x10]]
    %s41 = sld [smem:[#allocation2 + $0x11]]
    %s42 = sld [smem:[#allocation2 + $0x12]]
    %s43 = sld [smem:[#allocation2 + $0x13]]
    %s44 = sld [smem:[#allocation2 + $0x14]]
    %s45 = sld [smem:[#allocation2 + $0x15]]
    %s46 = sld [smem:[#allocation2 + $0x16]]
    %s47 = sld [smem:[#allocation2 + $0x17]]
    %s48 = sld [smem:[#allocation2 + $0x18]]
    %s49 = sld [smem:[#allocation2 + $0x19]]
    %s50 = sld [smem:[#allocation2 + $0x1a]]
    %s51 = sld [smem:[#allocation2 + $0x1b]]
    %s52 = sld [smem:[#allocation2 + $0x1c]]
    %s53 = sld [smem:[#allocation2 + $0x1d]]
    %s54 = sld [smem:[#allocation2 + $0x1e]]
    %s55 = sld [smem:[#allocation2 + $0x1f]]
    %s56 = sld [smem:[#allocation2 + $0x20]]
    %s57 = sld [smem:[#allocation2 + $0x21]]
    %s58 = sld [smem:[#allocation2 + $0x22]]
    %s59 = sld [smem:[#allocation2 + $0x23]]
    %s60 = sld [smem:[#allocation2 + $0x24]]
    %s61 = sld [smem:[#allocation2 + $0x25]]
    %s62 = sld [smem:[#allocation2 + $0x26]]
    %s63 = sld [smem:[#allocation2 + $0x27]]
    %s64 = sld [smem:[#allocation2 + $0x28]]
    %s65 = sld [smem:[#allocation2 + $0x29]]
    %s66 = sld [smem:[#allocation2 + $0x2a]]
    %s67 = sld [smem:[#allocation2 + $0x2b]]
    %v68 = vld [vmem:[%s1] sm:$0xff]
    %s69 = sadd.s32 0, 8
    %s70 = scalar_lea.vmem %s1, %s69
    %v71 = vld [vmem:[%s70] sm:$0xff]
    %v72 = vstv %s24
    %v73 = vmul.f32 %v72, %v68
    %v74 = vstv %s32
    %v75 = vadd.f32 %v74, %v73
    %v76 = vstv %s28
    %v77 = vmul.f32 %v76, %v71
    %v78 = vadd.f32 %v75, %v77
    %v79 = vmax.f32 %v78, 0.0
    %v80 = vstv %s25
    %v81 = vmul.f32 %v80, %v68
    %v82 = vstv %s33
    %v83 = vadd.f32 %v82, %v81
    %v84 = vstv %s29
    %v85 = vmul.f32 %v84, %v71
    %v86 = vadd.f32 %v83, %v85
    %v87 = vmax.f32 %v86, 0.0
    %v88 = vstv %s26
    %v89 = vmul.f32 %v88, %v68
    %v90 = vstv %s34
    %v91 = vadd.f32 %v90, %v89
    %v92 = vstv %s30
    %v93 = vmul.f32 %v92, %v71
    %v94 = vadd.f32 %v91, %v93
    %v95 = vmax.f32 %v94, 0.0
    %v96 = vstv %s27
    %v97 = vmul.f32 %v96, %v68
    %v98 = vstv %s35
    %v99 = vadd.f32 %v98, %v97
    %v100 = vstv %s31
    %v101 = vmul.f32 %v100, %v71
    %v102 = vadd.f32 %v99, %v101
    %v103 = vmax.f32 %v102, 0.0
    %v104 = vstv %s36
    %v105 = vmul.f32 %v104, %v79
    %v106 = vstv %s44
    %v107 = vadd.f32 %v106, %v105
    %v108 = vstv %s38
    %v109 = vmul.f32 %v108, %v87
    %v110 = vadd.f32 %v107, %v109
    %v111 = vstv %s40
    %v112 = vmul.f32 %v111, %v95
    %v113 = vadd.f32 %v110, %v112
    %v114 = vstv %s42
    %v115 = vmul.f32 %v114, %v103
    %v116 = vadd.f32 %v113, %v115
    %v117 = vstv %s37
    %v118 = vmul.f32 %v117, %v79
    %v119 = vstv %s45
    %v120 = vadd.f32 %v119, %v118
    %v121 = vstv %s39
    %v122 = vmul.f32 %v121, %v87
    %v123 = vadd.f32 %v120, %v122
    %v124 = vstv %s41
    %v125 = vmul.f32 %v124, %v95
    %v126 = vadd.f32 %v123, %v125
    %v127 = vstv %s43
    %v128 = vmul.f32 %v127, %v103
    %v129 = vadd.f32 %v126, %v128
    %v130 = vstv %s46
    %v131 = vmul.f32 %v130, %v116
    %v132 = vstv %s54
    %v133 = vadd.f32 %v132, %v131
    %v134 = vstv %s50
    %v135 = vmul.f32 %v134, %v129
    %v136 = vadd.f32 %v133, %v135
    %v137 = vmax.f32 %v136, 0.0
    %v138 = vstv %s47
    %v139 = vmul.f32 %v138, %v116
    %v140 = vstv %s55
    %v141 = vadd.f32 %v140, %v139
    %v142 = vstv %s51
    %v143 = vmul.f32 %v142, %v129
    %v144 = vadd.f32 %v141, %v143
    %v145 = vmax.f32 %v144, 0.0
    %v146 = vstv %s48
    %v147 = vmul.f32 %v146, %v116
    %v148 = vstv %s56
    %v149 = vadd.f32 %v148, %v147
    %v150 = vstv %s52
    %v151 = vmul.f32 %v150, %v129
    %v152 = vadd.f32 %v149, %v151
    %v153 = vmax.f32 %v152, 0.0
    %v154 = vstv %s49
    %v155 = vmul.f32 %v154, %v116
    %v156 = vstv %s57
    %v157 = vadd.f32 %v156, %v155
    %v158 = vstv %s53
    %v159 = vmul.f32 %v158, %v129
    %v160 = vadd.f32 %v157, %v159
    %v161 = vmax.f32 %v160, 0.0
    %v162 = vstv %s58
    %v163 = vmul.f32 %v162, %v137
    %v164 = vstv %s66
    %v165 = vadd.f32 %v164, %v163
    %v166 = vstv %s60
    %v167 = vmul.f32 %v166, %v145
    %v168 = vadd.f32 %v165, %v167
    %v169 = vstv %s62
    %v170 = vmul.f32 %v169, %v153
    %v171 = vadd.f32 %v168, %v170
    %v172 = vstv %s64
    %v173 = vmul.f32 %v172, %v161
    %v174 = vadd.f32 %v171, %v173
    %175 = vst [vmem:[%s2] sm:$0xff] %v174
    %v176 = vstv %s59
    %v177 = vmul.f32 %v176, %v137
    %v178 = vstv %s67
    %v179 = vadd.f32 %v178, %v177
    %v180 = vstv %s61
    %v181 = vmul.f32 %v180, %v145
    %v182 = vadd.f32 %v179, %v181
    %v183 = vstv %s63
    %v184 = vmul.f32 %v183, %v153
    %v185 = vadd.f32 %v182, %v184
    %v186 = vstv %s65
    %v187 = vmul.f32 %v186, %v161
    %v188 = vadd.f32 %v185, %v187
    %s189 = scalar_lea.vmem %s2, %s69
    %190 = vst [vmem:[%s189] sm:$0xff] %v188
    // Predicated region
    $region14: #{autoencoder_forward.1} parent=1 // pred_check
      _
    $region15: #{autoencoder_forward.1} parent=1 // pred_check_branch
      %192 = sbr.rel (0) target = $region17
    $region16: #{autoencoder_forward.1} parent=1 // pred_region
      _
    $region17: #{autoencoder_forward.1} parent=1 // pred_fallthru
      _
    // Predicated region
    $region18: #{autoencoder_forward.1} parent=1 // pred_check
      _
    $region19: #{autoencoder_forward.1} parent=1 // pred_check_branch
      %194 = sbr.rel (0) target = $region21
    $region20: #{autoencoder_forward.1} parent=1 // pred_region
      _
    $region21: #{autoencoder_forward.1} parent=1 // pred_fallthru
      _
    %195 = vsyncpa [#allocation3], 1

</llo_original>
